<compile_context>
chip_gen: v7x
topology: tpu7x:2x2x1
jax: 0.10.0
libtpu: 0.0.40
codegen_flags: <defaults>
</compile_context>

<pallas_src>
import functools
import math

import jax
import jax.numpy as jnp
from jax.experimental import pallas as pl
from jax.experimental.pallas import tpu as pltpu


def _normalizer_amp_kernel(x_ref, mean_ref, var_ref, o_ref, *, epsilon, clip_obs):
    # (1, Dp) vectors: rsqrt goes to the EUP slot, fully hidden under the x DMA.
    inv_std = jax.lax.rsqrt(var_ref[...] + epsilon)
    x = x_ref[...].astype(jnp.float32)                    # (tile_b, Dp)
    y = (x - mean_ref[...]) * inv_std                     # same rounding order as ref
    o_ref[...] = jnp.clip(y, -clip_obs, clip_obs).astype(o_ref.dtype)


def _tpu_budgets():
    """(tile_target_bytes, vmem_limit_bytes), generation-aware with safe fallback."""
    vmem_cap = None
    try:
        vmem_cap = getattr(pltpu.get_tpu_info(), "vmem_capacity_bytes", None)
    except Exception:
        vmem_cap = None
    if vmem_cap is not None and vmem_cap >= (100 << 20):
        # v5e/v6e: 128 MiB physical VMEM -> bigger tiles amortize per-step overhead.
        return 16 << 20, 80 << 20
    # v7x (64 MiB physical) or unknown: keep ~4x tile (x + out double-buffered)
    # plus the small mean/var buffers under ~48 MiB.
    return 8 << 20, 48 << 20


def _choose_tile_rows(n_rows, row_bytes, itemsize, target_bytes):
    """Fixed row-tile for a cdiv grid: multiple of the dtype sublane granularity,
    capped by the VMEM tile budget, with >= 2 (preferably even) grid steps."""
    gran = {4: 8, 2: 16, 1: 32}.get(itemsize, 8)
    if n_rows <= gran:
        return n_rows                                   # single full-array block (legal)
    cap = max(gran, (target_bytes // max(row_bytes, 1)) // gran * gran)
    steps = max(2, pl.cdiv(n_rows, cap))                # >= 2: pipelining + v7x dual TC
    if steps % 2:
        steps += 1                                      # even step count balances v7x cores
    tile = ((pl.cdiv(n_rows, steps) + gran - 1) // gran) * gran
    return max(gran, min(tile, cap))


def normalizer_amp_forward(x, mean, var, *, epsilon=1e-4, clip_obs=10.0,
                           force_pallas=False, small_bytes_threshold=4 << 20):
    """NormalizerAmp.forward: x (B, D) observations; mean/var (D,) running buffers."""
    B, D = x.shape
    mean_f32 = mean.astype(jnp.float32)
    var_f32 = var.astype(jnp.float32)

    # Below the crossover (~1-4 MiB on v5e/v6e, higher on v7x) the fused XLA
    # expression beats any kernel: pallas_call fixed cost dominates there.
    nbytes = B * D * x.dtype.itemsize
    if nbytes < small_bytes_threshold and not force_pallas:
        inv_std = jax.lax.rsqrt(var_f32 + jnp.float32(epsilon))
        y = (x.astype(jnp.float32) - mean_f32[None, :]) * inv_std[None, :]
        return jnp.clip(y, -clip_obs, clip_obs).astype(x.dtype)

    # Lane packing: make the last dim a multiple of 128 when possible.
    if D % 128 == 0:
        k = 1
    else:
        k = 128 // math.gcd(D, 128)
        if B % k != 0:
            k = 1                                       # full-D block is still legal
    Bp, Dp = B // k, D * k
    x_packed = x.reshape(Bp, Dp)
    mean2d = jnp.tile(mean_f32, k).reshape(1, Dp)
    var2d = jnp.tile(var_f32, k).reshape(1, Dp)

    tile_target, vmem_limit = _tpu_budgets()
    row_bytes = Dp * x.dtype.itemsize
    tile_b = _choose_tile_rows(Bp, row_bytes, x.dtype.itemsize, tile_target)
    grid = (pl.cdiv(Bp, tile_b),)                       # partial last block is masked

    kernel = functools.partial(_normalizer_amp_kernel,
                               epsilon=float(epsilon), clip_obs=float(clip_obs))

    out = pl.pallas_call(
        kernel,
        out_shape=jax.ShapeDtypeStruct((Bp, Dp), x.dtype),
        grid_spec=pltpu.PrefetchScalarGridSpec(
            num_scalar_prefetch=0,
            grid=grid,
            in_specs=[
                pl.BlockSpec((tile_b, Dp), lambda i: (i, 0)),   # x tile (streamed)
                pl.BlockSpec((1, Dp), lambda i: (0, 0)),        # mean (constant index)
                pl.BlockSpec((1, Dp), lambda i: (0, 0)),        # var  (constant index)
            ],
            out_specs=pl.BlockSpec((tile_b, Dp), lambda i: (i, 0)),
        ),
        compiler_params=pltpu.CompilerParams(
            dimension_semantics=("parallel",),          # shards steps across v7x's 2 TCs
            vmem_limit_bytes=vmem_limit,
        ),
    )(x_packed, mean2d, var2d)

    return out.reshape(B, D)


if __name__ == "__main__":
    key = jax.random.PRNGKey(0)
    kx, km, kv, kx2 = jax.random.split(key, 4)

    epsilon = 1e-4
    clip_obs = 10.0
    D = 32  # num_input_dim

    def reference(x, mean, var):
        return jnp.clip((x - mean[None, :]) / jnp.sqrt(var[None, :] + epsilon),
                        -clip_obs, clip_obs)

    mean = jax.random.normal(km, (D,), dtype=jnp.float32) * 0.5
    var = jax.nn.softplus(jax.random.normal(kv, (D,), dtype=jnp.float32)) + 0.1

    # Small module-scale case (batch=16, num_input_dim=32); force the Pallas path
    # so the kernel itself is exercised even below the XLA-fallback crossover.
    xs = jax.random.normal(kx, (16, D), dtype=jnp.float32) * 5.0
    out_s = jax.block_until_ready(
        normalizer_amp_forward(xs, mean, var, epsilon=epsilon, clip_obs=clip_obs,
                               force_pallas=True))
    assert out_s.shape == (16, D) and out_s.dtype == jnp.float32
    assert jnp.allclose(out_s, reference(xs, mean, var), atol=1e-4, rtol=1e-4), \
        "mismatch vs reference (small)"

    # Multi-tile case: exercises lane packing + the even-step cdiv grid.
    xl = jax.random.normal(kx2, (4096, D), dtype=jnp.float32) * 5.0
    out_l = jax.block_until_ready(
        normalizer_amp_forward(xl, mean, var, epsilon=epsilon, clip_obs=clip_obs,
                               force_pallas=True))
    assert jnp.allclose(out_l, reference(xl, mean, var), atol=1e-4, rtol=1e-4), \
        "mismatch vs reference (multi-tile)"

    # Tiny input routed through the fused-XLA fallback (below the crossover).
    out_t = jax.block_until_ready(
        normalizer_amp_forward(xs[:8], mean, var, epsilon=epsilon, clip_obs=clip_obs))
    assert jnp.allclose(out_t, reference(xs[:8], mean, var), atol=1e-4, rtol=1e-4), \
        "mismatch vs reference (fallback)"

    # TODO(synk): update()/update_from_moments()/update_normalizer() are stateful
    # training-time running-moment updates, not part of forward; they stay in plain JAX.
    print("KERNEL_OK")
</pallas_src>

<mosaic_0001>
module attributes {stable_mosaic.version = 11 : i64} {
  func.func @_normalizer_amp_kernel(%arg0: i32, %arg1: memref<4x128xf32, #tpu.memory_space<vmem>>, %arg2: memref<1x128xf32, #tpu.memory_space<vmem>>, %arg3: memref<1x128xf32, #tpu.memory_space<vmem>>, %arg4: memref<4x128xf32, #tpu.memory_space<vmem>>) attributes {dimension_semantics = [#tpu.dimension_semantics<parallel>], iteration_bounds = array<i64: 1>, scalar_prefetch = 0 : i64, scratch_operands = 0 : i64, tpu.core_type = #tpu.core_type<tc>, window_params = [{transform_indices = @transform_0, window_bounds = array<i64: 4, 128>}, {pipeline_mode = #tpu.pipeline_mode<synchronous>, transform_indices = @transform_1, window_bounds = array<i64: 1, 128>}, {pipeline_mode = #tpu.pipeline_mode<synchronous>, transform_indices = @transform_2, window_bounds = array<i64: 1, 128>}, {transform_indices = @transform_3, window_bounds = array<i64: 4, 128>}]} {
    %c0 = arith.constant 0 : index
    %c0_0 = arith.constant 0 : index
    %0 = vector.load %arg3[%c0, %c0_0] : memref<1x128xf32, #tpu.memory_space<vmem>>, vector<1x128xf32>
    %cst = arith.constant 9.99999974E-5 : f32
    %1 = vector.broadcast %cst : f32 to vector<1x128xf32>
    %2 = arith.addf %0, %1 : vector<1x128xf32>
    %3 = math.rsqrt %2 : vector<1x128xf32>
    %c0_1 = arith.constant 0 : index
    %c0_2 = arith.constant 0 : index
    %4 = vector.load %arg1[%c0_1, %c0_2] : memref<4x128xf32, #tpu.memory_space<vmem>>, vector<4x128xf32>
    %c0_3 = arith.constant 0 : index
    %c0_4 = arith.constant 0 : index
    %5 = vector.load %arg2[%c0_3, %c0_4] : memref<1x128xf32, #tpu.memory_space<vmem>>, vector<1x128xf32>
    %6 = vector.broadcast %5 : vector<1x128xf32> to vector<4x128xf32>
    %7 = arith.subf %4, %6 : vector<4x128xf32>
    %8 = vector.broadcast %3 : vector<1x128xf32> to vector<4x128xf32>
    %9 = arith.mulf %7, %8 : vector<4x128xf32>
    %cst_5 = arith.constant -1.000000e+01 : f32
    %cst_6 = arith.constant 1.000000e+01 : f32
    %10 = vector.broadcast %cst_5 : f32 to vector<4x128xf32>
    %11 = arith.maximumf %10, %9 : vector<4x128xf32>
    %12 = vector.broadcast %cst_6 : f32 to vector<4x128xf32>
    %13 = arith.minimumf %12, %11 : vector<4x128xf32>
    %c0_7 = arith.constant 0 : index
    %c0_8 = arith.constant 0 : index
    %14 = vector.load %arg4[%c0_7, %c0_8] : memref<4x128xf32, #tpu.memory_space<vmem>>, vector<4x128xf32>
    tpu.vector_store %arg4[%c0_7, %c0_8], %13 {strides = array<i32>} : memref<4x128xf32, #tpu.memory_space<vmem>>, vector<4x128xf32>,
    return
  }
  func.func @transform_0(%arg0: i32) -> (i32, i32) {
    %c0_i32 = arith.constant 0 : i32
    %c0_i32_0 = arith.constant 0 : i32
    return %arg0, %c0_i32 : i32, i32
  }
  func.func @transform_1(%arg0: i32) -> (i32, i32) {
    %c0_i32 = arith.constant 0 : i32
    %c0_i32_0 = arith.constant 0 : i32
    %c0_i32_1 = arith.constant 0 : i32
    return %c0_i32, %c0_i32_0 : i32, i32
  }
  func.func @transform_2(%arg0: i32) -> (i32, i32) {
    %c0_i32 = arith.constant 0 : i32
    %c0_i32_0 = arith.constant 0 : i32
    %c0_i32_1 = arith.constant 0 : i32
    return %c0_i32, %c0_i32_0 : i32, i32
  }
  func.func @transform_3(%arg0: i32) -> (i32, i32) {
    %c0_i32 = arith.constant 0 : i32
    %c0_i32_0 = arith.constant 0 : i32
    return %arg0, %c0_i32 : i32, i32
  }
}

</mosaic_0001>

<llo_original>
// kernel: tpu_custom_call.1
$region0: #{tpu_custom_call.1}
  #allocation0 [shape = 'u32[]', space=smem, size = 0x4, offset = 0x4, fixed_abs, tag = 'smem constant byte address 0x4 - core index']
  #allocation1 [shape = 'u32[144,128]{1,0:T(1,128)}', space=vmem, size = 0x12000, scoped, tag = 'internal scratch']
  %s0 = inlined_call_operand.hbm [shape: f32[4,128], index: 0, kind: input, shape index: {}]
  %s1 = inlined_call_operand.vmem [shape: f32[1,128], index: 1, kind: input, shape index: {}]
  %s2 = inlined_call_operand.vmem [shape: f32[1,128], index: 2, kind: input, shape index: {}]
  %s3 = inlined_call_operand.hbm [shape: f32[4,128], index: 3, kind: output, shape index: {}]
  %s4 = sld [smem:[#allocation0]]
  $region26: #{tpu_custom_call.1} parent=0
    _
  %s6 = ssub.s32 1, %s4
  %s7 = scalar_select 0, %s6, %s4
  $region1: #{tpu_custom_call.1} parent=0
    #allocation2 [shape = 'u8[2048]{0}', space=vmem, size = 0x800, scoped, tag = 'input window, operand 0, single buffered']
    #allocation3 [shape = 's32[1]{0}', space=sflag, size = 0x4, scoped, tag = 'scoped memory for tpu_custom_call.1']
    #allocation4 [shape = 's32[1]{0}', space=sflag, size = 0x4, scoped, tag = 'scoped memory for tpu_custom_call.1']
    #allocation5 [shape = 'u8[2048]{0}', space=vmem, size = 0x800, scoped, tag = 'output window, operand 0, single buffered']
    %8 = vsyncpa [#allocation3], 0
    %9 = vsyncpa [#allocation4], 0
    // Predicated region
    $region2: #{tpu_custom_call.1} parent=1 // pred_check
      _
    $region3: #{tpu_custom_call.1} parent=1 // pred_check_branch
      %11 = sbr.rel (0) target = $region5
    $region4: #{tpu_custom_call.1} parent=1 // pred_region
      %s13 = ssub.s32 64, 64
      %14 = vsyncadd [#allocation3], %s13
      %s16 = sshll.u32 [#allocation2], 4
      %s17 = int_to_ptr.vmem [resolvable:$true] %s16
      %19 = dma.hbm_to_vmem [thread:$0]  %s0, 64, %s17, [#allocation3]
    $region5: #{tpu_custom_call.1} parent=1 // pred_fallthru
      _
    // Predicated region
    $region6: #{tpu_custom_call.1} parent=1 // pred_check
      _
    $region7: #{tpu_custom_call.1} parent=1 // pred_check_branch
      %21 = sbr.rel (0) target = $region9
    $region8: #{tpu_custom_call.1} parent=1 // pred_region
      _
    $region9: #{tpu_custom_call.1} parent=1 // pred_fallthru
      _
    // Predicated region
    $region10: #{tpu_custom_call.1} parent=1 // pred_check
      _
    $region11: #{tpu_custom_call.1} parent=1 // pred_check_branch
      %23 = sbr.rel (0) target = $region13
    $region12: #{tpu_custom_call.1} parent=1 // pred_region
      _
    $region13: #{tpu_custom_call.1} parent=1 // pred_fallthru
      _
    // Predicated region
    $region14: #{tpu_custom_call.1} parent=1 // pred_check
      _
    $region15: #{tpu_custom_call.1} parent=1 // pred_check_branch
      %25 = sbr.rel (0) target = $region17
    $region16: #{tpu_custom_call.1} parent=1 // pred_region
      %26 = dma.done [#allocation3], 64
    $region17: #{tpu_custom_call.1} parent=1 // pred_fallthru
      _
    %v27 = vld [vmem:[%s2] sm:$0x1]
    %v28 = vadd.f32 %v27, 0.0001
    %v29 = vrsqrt.pop %v28
    %v30 = vld [vmem:[#allocation2] sm:$0xf]
    %v31 = vld [vmem:[%s1] sm:$0x1]
    %v33 = vlaneseq
    %v34 = vshrl.u32 %v33, 7
    %v35 = vsub.s32 0, %v34
    %v36 = vrot.slane %v31, %v35
    %v38 = vsub.f32 %v30, %v36
    %v40 = vlaneseq
    %v41 = vshrl.u32 %v40, 7
    %v42 = vsub.s32 0, %v41
    %v43 = vrot.slane %v29, %v42
    %v45 = vmul.f32 %v38, %v43
    %v46 = vmax.f32 %v45, -10.0
    %v47 = vmin.f32 %v46, 10.0
    %48 = vst [vmem:[#allocation5] sm:$0xf] %v47
    // Predicated region
    $region18: #{tpu_custom_call.1} parent=1 // pred_check
      _
    $region19: #{tpu_custom_call.1} parent=1 // pred_check_branch
      %50 = sbr.rel (0) target = $region21
    $region20: #{tpu_custom_call.1} parent=1 // pred_region
      %s52 = ssub.s32 64, 64
      %53 = vsyncadd [#allocation4], %s52
      %s55 = sshll.u32 [#allocation5], 4
      %s56 = int_to_ptr.vmem [resolvable:$true] %s55
      %58 = dma.vmem_to_hbm [thread:$0]  %s56, 64, %s3, [#allocation4]
    $region21: #{tpu_custom_call.1} parent=1 // pred_fallthru
      _
    // Predicated region
    $region22: #{tpu_custom_call.1} parent=1 // pred_check
      _
    $region23: #{tpu_custom_call.1} parent=1 // pred_check_branch
      %60 = sbr.rel (0) target = $region25
    $region24: #{tpu_custom_call.1} parent=1 // pred_region
      %61 = dma.done [#allocation4], 64
    $region25: #{tpu_custom_call.1} parent=1 // pred_fallthru
      _
    %62 = vsyncpa [#allocation3], 1
    %63 = vsyncpa [#allocation4], 1

</llo_original>
